<compile_context>
chip_gen: v5e
topology: v5e:2x2
jax: 0.10.0
libtpu: 0.0.40
codegen_flags: <defaults>
</compile_context>

<pallas_src>
import functools

import jax
import jax.numpy as jnp
from jax.experimental import pallas as pl
from jax.experimental.pallas import tpu as pltpu


def _round_up(x, m):
    return ((x + m - 1) // m) * m


def _mlpd_kernel(has_embed, *refs):
    if has_embed:
        x_ref, c_ref, w1_ref, b1_ref, w2_ref, tbl_ref, b2_ref, o_ref = refs
    else:
        x_ref, w1_ref, b1_ref, w2_ref, b2_ref, o_ref = refs
        c_ref = tbl_ref = None

    # h = LeakyReLU_0.2(x @ W1 + b1) -- x cast f32->bf16 on the VPU (hidden under
    # the DMA), bf16 MXU matmul with f32 accumulation.
    x = x_ref[...].astype(jnp.bfloat16)
    h = jnp.dot(x, w1_ref[...], preferred_element_type=jnp.float32)
    h = h + b1_ref[...]
    h = jnp.where(h >= 0.0, h, 0.2 * h)

    # Second Linear (out_ch -> 1) folded into the projection reduce:
    #   out_i = sum_j h_ij * (w2_j + e_ij) + b2
    g = w2_ref[...]                                      # (1, out_ch) f32
    if has_embed:
        bb = x_ref.shape[0]
        nc_pad = tbl_ref.shape[0]
        # In-kernel embedding gather as a one-hot matmul on the MXU (table is
        # tiny and resident in VMEM; no [B, out_ch] gather stream from HBM).
        cls = jax.lax.broadcasted_iota(jnp.int32, (bb, nc_pad), 1)
        onehot = (c_ref[...] == cls).astype(jnp.float32)            # (bb, nc_pad)
        e = jnp.dot(onehot, tbl_ref[...],
                    preferred_element_type=jnp.float32)             # (bb, out_ch)
        g = g + e

    out = jnp.sum(h * g, axis=1) + b2_ref[0, 0]          # (bb,) f32

    # Lane-dense store: output block is (1, bb).
    o_ref[...] = out.reshape(o_ref.shape).astype(o_ref.dtype)


def _choose_tile(batch, block_b, num_cores):
    # Prefer 128-row multiples (unmasked lane-dense stores + full bf16 sublane
    # packing); fall back to 8-row multiples only for tiny batches.
    if batch >= 128:
        bb = min(_round_up(block_b, 128), _round_up(batch, 128))
    else:
        bb = min(_round_up(block_b, 8), _round_up(batch, 8))
    if num_cores > 1:
        # Multi-TensorCore parts only (e.g. v7x): make >= num_cores grid steps
        # so the "parallel" axis can be sharded, keeping 128-row alignment.
        target = pl.cdiv(batch, num_cores)
        if batch >= 128 * num_cores:
            bb = min(bb, _round_up(target, 128))
        elif batch >= 8 * num_cores:
            bb = min(bb, _round_up(target, 8))
    return bb


@functools.partial(jax.jit, static_argnames=("block_b", "num_cores"))
def mlpd_forward(x, w1, b1, w2_row, b2, c=None, embed=None, *,
                 block_b=1024, num_cores=1):
    """x: [B, in_ch] f32, w1: [in_ch, out_ch] bf16, b1: [1, out_ch] f32,
    w2_row: [1, out_ch] f32, b2: [1, 1] f32,
    c: [B] int (class ids, used iff embed is not None),
    embed: [nc_pad, out_ch] f32 table (rows padded to a multiple of 8) or None."""
    B, in_ch = x.shape
    out_ch = w1.shape[1]
    has_embed = embed is not None

    bb = _choose_tile(B, block_b, num_cores)
    num_tiles = pl.cdiv(B, bb)   # no jnp.pad: Pallas handles the ragged last block

    in_specs = [pl.BlockSpec((bb, in_ch), lambda i: (i, 0))]        # x (streamed f32)
    args = [x]
    if has_embed:
        c_col = c.astype(jnp.int32).reshape(B, 1)
        in_specs.append(pl.BlockSpec((bb, 1), lambda i: (i, 0)))    # class ids
        args.append(c_col)
    # Resident operands: constant index_map -> Pallas does not re-DMA per step.
    in_specs += [
        pl.BlockSpec((in_ch, out_ch), lambda i: (0, 0)),            # W1 (bf16)
        pl.BlockSpec((1, out_ch), lambda i: (0, 0)),                # b1
        pl.BlockSpec((1, out_ch), lambda i: (0, 0)),                # W2 row
    ]
    args += [w1, b1, w2_row]
    if has_embed:
        nc_pad = embed.shape[0]
        in_specs.append(pl.BlockSpec((nc_pad, out_ch), lambda i: (0, 0)))  # table
        args.append(embed)
    in_specs.append(pl.BlockSpec(memory_space=pltpu.MemorySpace.SMEM))     # b2 scalar
    args.append(b2.reshape(1, 1).astype(jnp.float32))

    flops = 2 * B * in_ch * out_ch + 4 * B * out_ch
    bytes_accessed = (x.size * x.dtype.itemsize
                      + w1.size * w1.dtype.itemsize
                      + b1.size * b1.dtype.itemsize
                      + w2_row.size * w2_row.dtype.itemsize
                      + 4
                      + num_tiles * bb * 4)
    if has_embed:
        flops += 2 * B * embed.shape[0] * out_ch
        bytes_accessed += B * 4 + embed.size * embed.dtype.itemsize

    out = pl.pallas_call(
        functools.partial(_mlpd_kernel, has_embed),
        out_shape=jax.ShapeDtypeStruct((num_tiles, bb), jnp.float32),
        grid_spec=pltpu.PrefetchScalarGridSpec(
            num_scalar_prefetch=0,
            grid=(num_tiles,),
            in_specs=in_specs,
            out_specs=pl.BlockSpec((1, bb), lambda i: (i, 0)),      # lane-dense
        ),
        compiler_params=pltpu.CompilerParams(
            dimension_semantics=("parallel",),
        ),
        cost_estimate=pl.CostEstimate(
            flops=flops, transcendentals=0, bytes_accessed=bytes_accessed),
    )(*args)

    # Pad rows of the ragged last tile are garbage; slice them off. Never reduce
    # across rows inside the kernel, so this is safe.
    return out.reshape(num_tiles * bb, 1)[:B]


def spectral_normalize(w):
    # w: [out, in] (PyTorch convention). sigma = largest singular value.
    sigma = jnp.linalg.svd(w, compute_uv=False)[0]
    return w / sigma


def make_params(key, in_ch, out_ch, num_classes):
    k1, k2, k3, k4, k5 = jax.random.split(key, 5)
    # nn.Linear-style init (uniform in +/- 1/sqrt(fan_in))
    bound1 = 1.0 / jnp.sqrt(in_ch)
    w1_t = jax.random.uniform(k1, (out_ch, in_ch), jnp.float32, -bound1, bound1)
    b1 = jax.random.uniform(k2, (out_ch,), jnp.float32, -bound1, bound1)
    bound2 = 1.0 / jnp.sqrt(out_ch)
    w2_t = jax.random.uniform(k3, (1, out_ch), jnp.float32, -bound2, bound2)
    b2 = jax.random.uniform(k4, (1,), jnp.float32, -bound2, bound2)

    w1_t = spectral_normalize(w1_t)   # [out_ch, in_ch]
    w2_t = spectral_normalize(w2_t)   # [1, out_ch]

    embed = None
    if num_classes > 0:
        tbl = jax.random.normal(k5, (num_classes, out_ch), jnp.float32)
        nc_pad = max(8, _round_up(num_classes, 8))    # sublane-friendly table rows
        embed = jnp.pad(tbl, ((0, nc_pad - num_classes), (0, 0)))

    return dict(
        w1=w1_t.T.astype(jnp.bfloat16),   # [in_ch, out_ch], stored bf16 (resident)
        b1=b1.reshape(1, out_ch),         # [1, out_ch]
        w2_row=w2_t,                      # [1, out_ch]  (folded reduce)
        b2=b2.reshape(1, 1),              # [1, 1]
        embed=embed,                      # [nc_pad, out_ch] f32 or None
    )


def mlpd_apply(params, x, c, *, block_b=1024, num_cores=1):
    has_embed = params["embed"] is not None
    return mlpd_forward(
        x, params["w1"], params["b1"], params["w2_row"], params["b2"],
        c=c if has_embed else None,
        embed=params["embed"],
        block_b=block_b, num_cores=num_cores)


def mlpd_reference(params, x, c):
    h = x @ params["w1"].astype(jnp.float32) + params["b1"]
    h = jnp.where(h >= 0.0, h, 0.2 * h)
    out = h @ params["w2_row"].T + params["b2"]
    if params["embed"] is not None:
        e = jnp.take(params["embed"], c, axis=0)
        out = out + jnp.sum(e * h, axis=1, keepdims=True)
    return out


if __name__ == "__main__":
    key = jax.random.PRNGKey(0)
    kx, kc, kp, kx2, kc2 = jax.random.split(key, 5)

    B, in_ch, out_ch = 8, 256, 128
    x = jax.random.normal(kx, (B, in_ch), jnp.float32)

    # Case 1: num_classes = 0 (default module config; c ignored, no embed stream)
    params0 = make_params(kp, in_ch, out_ch, num_classes=0)
    c0 = jnp.zeros((B,), jnp.int32)
    out0 = jax.block_until_ready(mlpd_apply(params0, x, c0))
    ref0 = mlpd_reference(params0, x, c0)
    assert out0.shape == (B, 1)
    assert jnp.allclose(out0, ref0, atol=5e-2, rtol=5e-2), \
        f"max abs diff {jnp.max(jnp.abs(out0 - ref0))}"

    # Case 2: num_classes > 0 (exercise the in-kernel one-hot embedding gather)
    params1 = make_params(kp, in_ch, out_ch, num_classes=5)
    c1 = jax.random.randint(kc, (B,), 0, 5)
    out1 = jax.block_until_ready(mlpd_apply(params1, x, c1))
    ref1 = mlpd_reference(params1, x, c1)
    assert out1.shape == (B, 1)
    assert jnp.allclose(out1, ref1, atol=5e-2, rtol=5e-2), \
        f"max abs diff {jnp.max(jnp.abs(out1 - ref1))}"

    # Case 3: ragged batch + multi-step grid with 128-row tiles (exercises the
    # no-pad last-block path and lane-dense unmasked stores)
    B2 = 160
    x2 = jax.random.normal(kx2, (B2, in_ch), jnp.float32)
    c2 = jax.random.randint(kc2, (B2,), 0, 5)
    out2 = jax.block_until_ready(mlpd_apply(params1, x2, c2, block_b=128))
    ref2 = mlpd_reference(params1, x2, c2)
    assert out2.shape == (B2, 1)
    assert jnp.allclose(out2, ref2, atol=5e-2, rtol=5e-2), \
        f"max abs diff {jnp.max(jnp.abs(out2 - ref2))}"

    print("KERNEL_OK")
</pallas_src>

<mosaic_0001>
module attributes {stable_mosaic.version = 11 : i64} {
  func.func @_mlpd_kernel(%arg0: i32, %arg1: memref<8x256xf32, #tpu.memory_space<vmem>>, %arg2: memref<256x128xbf16, #tpu.memory_space<vmem>>, %arg3: memref<1x128xf32, #tpu.memory_space<vmem>>, %arg4: memref<1x128xf32, #tpu.memory_space<vmem>>, %arg5: memref<1x1xf32, #tpu.memory_space<smem>>, %arg6: memref<1x8xf32, #tpu.memory_space<vmem>>) attributes {dimension_semantics = [#tpu.dimension_semantics<parallel>], iteration_bounds = array<i64: 1>, scalar_prefetch = 0 : i64, scratch_operands = 0 : i64, tpu.core_type = #tpu.core_type<tc>, window_params = [{transform_indices = @transform_0, window_bounds = array<i64: 8, 256>}, {pipeline_mode = #tpu.pipeline_mode<synchronous>, transform_indices = @transform_1, window_bounds = array<i64: 256, 128>}, {pipeline_mode = #tpu.pipeline_mode<synchronous>, transform_indices = @transform_2, window_bounds = array<i64: 1, 128>}, {pipeline_mode = #tpu.pipeline_mode<synchronous>, transform_indices = @transform_3, window_bounds = array<i64: 1, 128>}, {transform_indices = @transform_4, window_bounds = array<i64: 1, 1>}, {transform_indices = @transform_5, window_bounds = array<i64: 1, 8>}]} {
    %c0 = arith.constant 0 : index
    %c0_0 = arith.constant 0 : index
    %0 = vector.load %arg1[%c0, %c0_0] : memref<8x256xf32, #tpu.memory_space<vmem>>, vector<8x256xf32>
    %1 = arith.truncf %0 : vector<8x256xf32> to vector<8x256xbf16>
    %c0_1 = arith.constant 0 : index
    %c0_2 = arith.constant 0 : index
    %2 = vector.load %arg2[%c0_1, %c0_2] : memref<256x128xbf16, #tpu.memory_space<vmem>>, vector<256x128xbf16>
    %cst = arith.constant dense<0.000000e+00> : vector<8x128xf32>
    %3 = tpu.matmul %1, %2, %cst {dimension_numbers = #tpu.dot_dimension_numbers<[1], [0], [0], [1], [0, 0, 1, 1], [], []>} : vector<8x256xbf16>, vector<256x128xbf16>, vector<8x128xf32> -> vector<8x128xf32>
    %c0_3 = arith.constant 0 : index
    %c0_4 = arith.constant 0 : index
    %4 = vector.load %arg3[%c0_3, %c0_4] : memref<1x128xf32, #tpu.memory_space<vmem>>, vector<1x128xf32>
    %5 = vector.broadcast %4 : vector<1x128xf32> to vector<8x128xf32>
    %6 = arith.addf %3, %5 : vector<8x128xf32>
    %cst_5 = arith.constant 0.000000e+00 : f32
    %7 = vector.broadcast %cst_5 : f32 to vector<8x128xf32>
    %8 = arith.cmpf oge, %6, %7 : vector<8x128xf32>
    %cst_6 = arith.constant 2.000000e-01 : f32
    %9 = vector.broadcast %cst_6 : f32 to vector<8x128xf32>
    %10 = arith.mulf %9, %6 : vector<8x128xf32>
    %11 = arith.select %8, %6, %10 : vector<8x128xi1>, vector<8x128xf32>
    %c0_7 = arith.constant 0 : index
    %c0_8 = arith.constant 0 : index
    %12 = vector.load %arg4[%c0_7, %c0_8] : memref<1x128xf32, #tpu.memory_space<vmem>>, vector<1x128xf32>
    %13 = vector.broadcast %12 : vector<1x128xf32> to vector<8x128xf32>
    %14 = arith.mulf %11, %13 : vector<8x128xf32>
    %cst_9 = arith.constant dense<0.000000e+00> : vector<8xf32>
    %15 = vector.multi_reduction <add>, %14, %cst_9 [1] : vector<8x128xf32> to vector<8xf32>
    %c0_10 = arith.constant 0 : index
    %c0_11 = arith.constant 0 : index
    %16 = memref.load %arg5[%c0_10, %c0_11] : memref<1x1xf32, #tpu.memory_space<smem>>
    %17 = vector.broadcast %16 : f32 to vector<8xf32>
    %18 = arith.addf %15, %17 : vector<8xf32>
    %19 = vector.shape_cast %18 : vector<8xf32> to vector<1x8xf32>
    %c0_12 = arith.constant 0 : index
    %c0_13 = arith.constant 0 : index
    %20 = vector.load %arg6[%c0_12, %c0_13] : memref<1x8xf32, #tpu.memory_space<vmem>>, vector<1x8xf32>
    tpu.vector_store %arg6[%c0_12, %c0_13], %19 {strides = array<i32>} : memref<1x8xf32, #tpu.memory_space<vmem>>, vector<1x8xf32>,
    return
  }
  func.func @transform_0(%arg0: i32) -> (i32, i32) {
    %c0_i32 = arith.constant 0 : i32
    %c0_i32_0 = arith.constant 0 : i32
    return %arg0, %c0_i32 : i32, i32
  }
  func.func @transform_1(%arg0: i32) -> (i32, i32) {
    %c0_i32 = arith.constant 0 : i32
    %c0_i32_0 = arith.constant 0 : i32
    %c0_i32_1 = arith.constant 0 : i32
    return %c0_i32, %c0_i32_0 : i32, i32
  }
  func.func @transform_2(%arg0: i32) -> (i32, i32) {
    %c0_i32 = arith.constant 0 : i32
    %c0_i32_0 = arith.constant 0 : i32
    %c0_i32_1 = arith.constant 0 : i32
    return %c0_i32, %c0_i32_0 : i32, i32
  }
  func.func @transform_3(%arg0: i32) -> (i32, i32) {
    %c0_i32 = arith.constant 0 : i32
    %c0_i32_0 = arith.constant 0 : i32
    %c0_i32_1 = arith.constant 0 : i32
    return %c0_i32, %c0_i32_0 : i32, i32
  }
  func.func @transform_4(%arg0: i32) -> (i32, i32) {
    %c0_i32 = arith.constant 0 : i32
    %c0_i32_0 = arith.constant 0 : i32
    %c0_i32_1 = arith.constant 0 : i32
    return %c0_i32, %c0_i32_0 : i32, i32
  }
  func.func @transform_5(%arg0: i32) -> (i32, i32) {
    %c0_i32 = arith.constant 0 : i32
    %c0_i32_0 = arith.constant 0 : i32
    return %arg0, %c0_i32 : i32, i32
  }
}

</mosaic_0001>

<llo_original>
// kernel: mlpd_forward.1
$region0: #{mlpd_forward.1}
  #allocation0 [shape = 'u32[]', space=smem, size = 0x4, offset = 0x4, fixed_abs, tag = 'smem constant byte address 0x4 - core index']
  #allocation1 [shape = 'u32[72,128]{1,0:T(1,128)}', space=vmem, size = 0x9000, scoped, tag = 'internal scratch']
  #allocation2 [shape = 'f32[1,1]{1,0:T(1,128)S(6)}', space=smem, size = 0x200, scoped, tag = 'scoped memory for mlpd_forward.1']
  %s0 = inlined_call_operand.hbm [shape: f32[8,256], index: 0, kind: input, shape index: {}]
  %s1 = inlined_call_operand.hbm [shape: bf16[256,128], index: 1, kind: input, shape index: {}]
  %s2 = inlined_call_operand.vmem [shape: f32[1,128], index: 2, kind: input, shape index: {}]
  %s3 = inlined_call_operand.vmem [shape: f32[1,128], index: 3, kind: input, shape index: {}]
  %s4 = inlined_call_operand.<no memory space> [shape: f32[1,1], index: 4, kind: input, shape index: {}]
  %s5 = inlined_call_operand.hbm [shape: f32[1,8], index: 5, kind: output, shape index: {}]
  %s6 = sld [smem:[#allocation0]]
  $region38: #{mlpd_forward.1} parent=0
    _
  %s8 = ssub.s32 1, %s6
  %s9 = scalar_select 0, %s8, %s6
  %10 = sst [smem:[#allocation2]] %s4
  $region1: #{mlpd_forward.1} parent=0
    #allocation3 [shape = 'u8[8192]{0}', space=vmem, size = 0x2000, scoped, tag = 'input window, operand 0, single buffered']
    #allocation4 [shape = 's32[1]{0}', space=sflag, size = 0x4, scoped, tag = 'scoped memory for mlpd_forward.1']
    #allocation5 [shape = 's32[1]{0}', space=sflag, size = 0x4, scoped, tag = 'scoped memory for mlpd_forward.1']
    #allocation6 [shape = 'u8[65536]{0}', space=vmem, size = 0x10000, scoped, tag = 'input window, operand 1, single buffered']
    #allocation7 [shape = 's32[1]{0}', space=sflag, size = 0x4, scoped, tag = 'scoped memory for mlpd_forward.1']
    #allocation8 [shape = 'u8[512]{0}', space=vmem, size = 0x400, scoped, tag = 'output window, operand 0, single buffered']
    %11 = vsyncpa [#allocation4], 0
    %12 = vsyncpa [#allocation7], 0
    %13 = vsyncpa [#allocation5], 0
    // Predicated region
    $region2: #{mlpd_forward.1} parent=1 // pred_check
      _
    $region3: #{mlpd_forward.1} parent=1 // pred_check_branch
      %15 = sbr.rel (0) target = $region5
    $region4: #{mlpd_forward.1} parent=1 // pred_region
      %17 = vsyncadd [#allocation4], 0
      %s19 = sshll.u32 %s0, 4
      %s20 = int_to_ptr.hbm [resolvable:$true] %s19
      %s21 = sshll.u32 [#allocation3], 4
      %s22 = int_to_ptr.vmem [resolvable:$true] %s21
      %24 = dma.hbm_to_vmem [thread:$0]  %s20, 256, %s22, [#allocation4]
    $region5: #{mlpd_forward.1} parent=1 // pred_fallthru
      _
    // Predicated region
    $region6: #{mlpd_forward.1} parent=1 // pred_check
      _
    $region7: #{mlpd_forward.1} parent=1 // pred_check_branch
      %26 = sbr.rel (0) target = $region9
    $region8: #{mlpd_forward.1} parent=1 // pred_region
      %28 = vsyncadd [#allocation7], 0
      %s29 = sshll.u32 %s1, 4
      %s30 = int_to_ptr.hbm [resolvable:$true] %s29
      %s31 = sshll.u32 [#allocation6], 4
      %s32 = int_to_ptr.vmem [resolvable:$true] %s31
      %37 = dma.hbm_to_vmem [thread:$0]  %s30, 2048, %s32, [#allocation7], 64, 64, 4
    $region9: #{mlpd_forward.1} parent=1 // pred_fallthru
      _
    // Predicated region
    $region10: #{mlpd_forward.1} parent=1 // pred_check
      _
    $region11: #{mlpd_forward.1} parent=1 // pred_check_branch
      %39 = sbr.rel (0) target = $region13
    $region12: #{mlpd_forward.1} parent=1 // pred_region
      _
    $region13: #{mlpd_forward.1} parent=1 // pred_fallthru
      _
    // Predicated region
    $region14: #{mlpd_forward.1} parent=1 // pred_check
      _
    $region15: #{mlpd_forward.1} parent=1 // pred_check_branch
      %41 = sbr.rel (0) target = $region17
    $region16: #{mlpd_forward.1} parent=1 // pred_region
      _
    $region17: #{mlpd_forward.1} parent=1 // pred_fallthru
      _
    // Predicated region
    $region18: #{mlpd_forward.1} parent=1 // pred_check
      _
    $region19: #{mlpd_forward.1} parent=1 // pred_check_branch
      %43 = sbr.rel (0) target = $region21
    $region20: #{mlpd_forward.1} parent=1 // pred_region
      _
    $region21: #{mlpd_forward.1} parent=1 // pred_fallthru
      _
    // Predicated region
    $region22: #{mlpd_forward.1} parent=1 // pred_check
      _
    $region23: #{mlpd_forward.1} parent=1 // pred_check_branch
      %45 = sbr.rel (0) target = $region25
    $region24: #{mlpd_forward.1} parent=1 // pred_region
      %47 = dma.done [#allocation4], 256
    $region25: #{mlpd_forward.1} parent=1 // pred_fallthru
      _
    // Predicated region
    $region26: #{mlpd_forward.1} parent=1 // pred_check
      _
    $region27: #{mlpd_forward.1} parent=1 // pred_check_branch
      %49 = sbr.rel (0) target = $region29
    $region28: #{mlpd_forward.1} parent=1 // pred_region
      %51 = dma.done [#allocation7], 2048
    $region29: #{mlpd_forward.1} parent=1 // pred_fallthru
      _
    %v52 = vld [vmem:[#allocation3] sm:$0xff]
    %v53 = vld [vmem:[#allocation3 + $0x8] sm:$0xff]
    %v54 = vpack.c.bf16 %v52, %v52
    %v55 = vpack.c.bf16 %v53, %v53
    %v56 = vld [vmem:[#allocation6] sm:$0xf]
    %v57 = vld [vmem:[#allocation6 + $0x4] sm:$0xf]
    %v58 = vld [vmem:[#allocation6 + $0x8] sm:$0xf]
    %v59 = vld [vmem:[#allocation6 + $0xc] sm:$0xf]
    %v60 = vld [vmem:[#allocation6 + $0x10] sm:$0xf]
    %v61 = vld [vmem:[#allocation6 + $0x14] sm:$0xf]
    %v62 = vld [vmem:[#allocation6 + $0x18] sm:$0xf]
    %v63 = vld [vmem:[#allocation6 + $0x1c] sm:$0xf]
    %v64 = vld [vmem:[#allocation6 + $0x20] sm:$0xf]
    %v65 = vld [vmem:[#allocation6 + $0x24] sm:$0xf]
    %v66 = vld [vmem:[#allocation6 + $0x28] sm:$0xf]
    %v67 = vld [vmem:[#allocation6 + $0x2c] sm:$0xf]
    %v68 = vld [vmem:[#allocation6 + $0x30] sm:$0xf]
    %v69 = vld [vmem:[#allocation6 + $0x34] sm:$0xf]
    %v70 = vld [vmem:[#allocation6 + $0x38] sm:$0xf]
    %v71 = vld [vmem:[#allocation6 + $0x3c] sm:$0xf]
    %v72 = vld [vmem:[#allocation6 + $0x40] sm:$0xf]
    %v73 = vld [vmem:[#allocation6 + $0x44] sm:$0xf]
    %v74 = vld [vmem:[#allocation6 + $0x48] sm:$0xf]
    %v75 = vld [vmem:[#allocation6 + $0x4c] sm:$0xf]
    %v76 = vld [vmem:[#allocation6 + $0x50] sm:$0xf]
    %v77 = vld [vmem:[#allocation6 + $0x54] sm:$0xf]
    %v78 = vld [vmem:[#allocation6 + $0x58] sm:$0xf]
    %v79 = vld [vmem:[#allocation6 + $0x5c] sm:$0xf]
    %v80 = vld [vmem:[#allocation6 + $0x60] sm:$0xf]
    %v81 = vld [vmem:[#allocation6 + $0x64] sm:$0xf]
    %v82 = vld [vmem:[#allocation6 + $0x68] sm:$0xf]
    %v83 = vld [vmem:[#allocation6 + $0x6c] sm:$0xf]
    %v84 = vld [vmem:[#allocation6 + $0x70] sm:$0xf]
    %v85 = vld [vmem:[#allocation6 + $0x74] sm:$0xf]
    %v86 = vld [vmem:[#allocation6 + $0x78] sm:$0xf]
    %v87 = vld [vmem:[#allocation6 + $0x7c] sm:$0xf]
    %v88 = vld [vmem:[%s2] sm:$0x1]
    %v90 = vperm.slane %v88, 0
    %v124 = vunpack.c.l.b16 %v56
    %v125 = vunpack.c.l.b16 %v57
    %v126 = vunpack.c.l.b16 %v58
    %v127 = vunpack.c.l.b16 %v59
    %v128 = vunpack.c.l.b16 %v60
    %v129 = vunpack.c.l.b16 %v61
    %v130 = vunpack.c.l.b16 %v62
    %v131 = vunpack.c.l.b16 %v63
    %v132 = vunpack.c.l.b16 %v64
    %v133 = vunpack.c.l.b16 %v65
    %v134 = vunpack.c.l.b16 %v66
    %v135 = vunpack.c.l.b16 %v67
    %v136 = vunpack.c.l.b16 %v68
    %v137 = vunpack.c.l.b16 %v69
    %v138 = vunpack.c.l.b16 %v70
    %v139 = vunpack.c.l.b16 %v71
    %v140 = vunpack.c.l.b16 %v72
    %v141 = vunpack.c.l.b16 %v73
    %v142 = vunpack.c.l.b16 %v74
    %v143 = vunpack.c.l.b16 %v75
    %v144 = vunpack.c.l.b16 %v76
    %v145 = vunpack.c.l.b16 %v77
    %v146 = vunpack.c.l.b16 %v78
    %v147 = vunpack.c.l.b16 %v79
    %v148 = vunpack.c.l.b16 %v80
    %v149 = vunpack.c.l.b16 %v81
    %v150 = vunpack.c.l.b16 %v82
    %v151 = vunpack.c.l.b16 %v83
    %v152 = vunpack.c.l.b16 %v84
    %v153 = vunpack.c.l.b16 %v85
    %v154 = vunpack.c.l.b16 %v86
    %v155 = vunpack.c.l.b16 %v87
    %v156 = vpack.c.b16 %v125, %v124
    %v157 = vpack.c.b16 %v127, %v126
    %v158 = vpack.c.b16 %v129, %v128
    %v159 = vpack.c.b16 %v131, %v130
    %v160 = vpack.c.b16 %v133, %v132
    %v161 = vpack.c.b16 %v135, %v134
    %v162 = vpack.c.b16 %v137, %v136
    %v163 = vpack.c.b16 %v139, %v138
    %v164 = vpack.c.b16 %v141, %v140
    %v165 = vpack.c.b16 %v143, %v142
    %v166 = vpack.c.b16 %v145, %v144
    %v167 = vpack.c.b16 %v147, %v146
    %v168 = vpack.c.b16 %v149, %v148
    %v169 = vpack.c.b16 %v151, %v150
    %v170 = vpack.c.b16 %v153, %v152
    %v171 = vpack.c.b16 %v155, %v154
    %188 = vmatpush.bf16.msra.mxu0 %v163
    %189 = vmatpush.bf16.msra.mxu0 %v162
    %190 = vmatpush.bf16.msra.mxu0 %v161
    %191 = vmatpush.bf16.msra.mxu0 %v160
    %192 = vmatpush.bf16.msra.mxu0 %v159
    %193 = vmatpush.bf16.msra.mxu0 %v158
    %194 = vmatpush.bf16.msra.mxu0 %v157
    %195 = vmatpush.bf16.msra.mxu0 %v156
    %196 = vmatmul.bf16.gmra.mxu0 %v54
    %v197 = vpop.f32.mrf.mxu0
    %v198 = vadd.f32 %v90, %v197
    %v199 = vpop.f32.mrf.mxu0
    %200 = vdwg.mxu0
    %201 = vmatpush.bf16.msra.mxu0 %v171
    %202 = vmatpush.bf16.msra.mxu0 %v170
    %203 = vmatpush.bf16.msra.mxu0 %v169
    %204 = vmatpush.bf16.msra.mxu0 %v168
    %205 = vmatpush.bf16.msra.mxu0 %v167
    %206 = vmatpush.bf16.msra.mxu0 %v166
    %207 = vmatpush.bf16.msra.mxu0 %v165
    %208 = vmatpush.bf16.msra.mxu0 %v164
    %209 = vmatmul.bf16.gmra.mxu0 %v55
    %v210 = vpop.f32.mrf.mxu0
    %v211 = vadd.f32 %v198, %v210
    %v212 = vpop.f32.mrf.mxu0
    %213 = vdwg.mxu0
    %vm214 = vcmp.ge.f32.partialorder %v211, 0.0
    %v215 = vmul.f32 %v211, 0.2
    %v216 = vsel %vm214, %v211, %v215
    %v217 = vld [vmem:[%s3] sm:$0x1]
    %v219 = vperm.slane %v217, 0
    %v221 = vmul.f32 %v216, %v219
    %222 = vadd.xlane.f32.xlu0 %v221
    %v223 = vpop.xlane.xlu0 %222
    %s224 = sld [smem:[#allocation2]]
    %v225 = vstv %s224
    %v226 = vadd.f32 %v223, %v225
    %v228 = vlaneseq
    %v229 = vand.u32 %v228, 127
    %v230 = vperm.slane %v226, %v229
    %vm232 = vcmask 57344
    %233 = vst.msk [vmem:[#allocation8] sm:$0x1] %vm232, %v230
    // Predicated region
    $region30: #{mlpd_forward.1} parent=1 // pred_check
      _
    $region31: #{mlpd_forward.1} parent=1 // pred_check_branch
      %235 = sbr.rel (0) target = $region33
    $region32: #{mlpd_forward.1} parent=1 // pred_region
      %237 = vsyncadd [#allocation5], 0
      %s239 = sshll.u32 [#allocation8], 4
      %s240 = int_to_ptr.vmem [resolvable:$true] %s239
      %s241 = sshll.u32 %s5, 4
      %s242 = int_to_ptr.hbm [resolvable:$true] %s241
      %244 = dma.vmem_to_hbm [thread:$0]  %s240, 16, %s242, [#allocation5]
    $region33: #{mlpd_forward.1} parent=1 // pred_fallthru
      _
    // Predicated region
    $region34: #{mlpd_forward.1} parent=1 // pred_check
      _
    $region35: #{mlpd_forward.1} parent=1 // pred_check_branch
      %246 = sbr.rel (0) target = $region37
    $region36: #{mlpd_forward.1} parent=1 // pred_region
      %248 = dma.done [#allocation5], 16
    $region37: #{mlpd_forward.1} parent=1 // pred_fallthru
      _
    %249 = vsyncpa [#allocation4], 1
    %250 = vsyncpa [#allocation7], 1
    %251 = vsyncpa [#allocation5], 1

</llo_original>
